<compile_context>
chip_gen: v5e
topology: v5e:2x2
jax: 0.10.0
libtpu: 0.0.40
codegen_flags: <defaults>
</compile_context>

<pallas_src>
import math

import jax
import jax.numpy as jnp
from jax import lax
from jax.experimental import pallas as pl
from jax.experimental.pallas import tpu as pltpu


# ---------------------------------------------------------------------------
# Tiling helpers
# ---------------------------------------------------------------------------
def _sublane_align(dtype):
    """Minimum second-to-last-dim tile multiple for this dtype (sublane packing)."""
    bits = jnp.dtype(dtype).itemsize * 8
    return max(8, 256 // bits)       # f32 -> 8, bf16 -> 16, int8/fp8 -> 32


def _pick_tile(dim, target, align):
    """Largest multiple of `align` that divides `dim` and is <= target, else the full
    dim (full-dim blocks always satisfy the TPU (8,128) tiling rule).
    # TODO(synk): pad + cdiv instead of the full-dim fallback for huge awkward dims."""
    if dim <= target:
        return dim
    t = (target // align) * align
    while t >= align:
        if dim % t == 0:
            return t
        t -= align
    return dim


# ---------------------------------------------------------------------------
# Kernel 1: tiled linear   y = x @ Wt + b
#   x: (M, K)   Wt: (K, N) pre-transposed   b: (1, N) f32   ->   y: (M, N)
# ---------------------------------------------------------------------------
def _linear_kernel(x_ref, wt_ref, b_ref, o_ref, acc_ref):
    k = pl.program_id(2)

    @pl.when(k == 0)
    def _():
        acc_ref[...] = jnp.zeros(acc_ref.shape, dtype=acc_ref.dtype)

    acc_ref[...] += jnp.dot(x_ref[...], wt_ref[...],
                            preferred_element_type=jnp.float32)

    @pl.when(k == pl.num_programs(2) - 1)
    def _():
        o_ref[...] = (acc_ref[...]
                      + b_ref[...].astype(jnp.float32)).astype(o_ref.dtype)


def linear(x, wt, b, *, out_dtype=None):
    M, K = x.shape
    _, N = wt.shape
    out_dtype = out_dtype if out_dtype is not None else x.dtype

    tm = _pick_tile(M, 512, _sublane_align(x.dtype))
    tn = _pick_tile(N, 512, 128)
    tk = _pick_tile(K, 1024, 128)
    grid = (M // tm, N // tn, K // tk)

    cost = pl.CostEstimate(
        flops=int(2 * M * N * K),
        transcendentals=0,
        bytes_accessed=int(M * K * x.dtype.itemsize * (N // tn)        # x re-read per N tile
                           + K * N * wt.dtype.itemsize * (M // tm)     # W re-read per M tile
                           + M * N * jnp.dtype(out_dtype).itemsize     # output written once
                           + N * b.dtype.itemsize * (M // tm)),
    )

    return pl.pallas_call(
        _linear_kernel,
        out_shape=jax.ShapeDtypeStruct((M, N), out_dtype),
        grid_spec=pltpu.PrefetchScalarGridSpec(
            num_scalar_prefetch=0,
            grid=grid,
            in_specs=[
                pl.BlockSpec((tm, tk), lambda i, j, k: (i, k)),
                pl.BlockSpec((tk, tn), lambda i, j, k: (k, j)),
                pl.BlockSpec((1, tn), lambda i, j, k: (0, j)),
            ],
            out_specs=pl.BlockSpec((tm, tn), lambda i, j, k: (i, j)),
            scratch_shapes=[pltpu.VMEM((tm, tn), jnp.float32)],
        ),
        compiler_params=pltpu.CompilerParams(
            dimension_semantics=("parallel", "parallel", "arbitrary")),
        cost_estimate=cost,
    )(x, wt, b)


# ---------------------------------------------------------------------------
# Kernel 2: head-major flash attention
#   q: (B, H, Sq, D)   k, v: (B, H, Sk, D)   ->   o: (B, H, Sq, D)
#   1/sqrt(D) is already folded into the q projection.
# ---------------------------------------------------------------------------
def _flash_attn_kernel(q_ref, k_ref, v_ref, o_ref, m_ref, l_ref, acc_ref):
    ki = pl.program_id(3)

    @pl.when(ki == 0)
    def _():
        m_ref[...] = jnp.full(m_ref.shape, -jnp.inf, dtype=m_ref.dtype)
        l_ref[...] = jnp.zeros(l_ref.shape, dtype=l_ref.dtype)
        acc_ref[...] = jnp.zeros(acc_ref.shape, dtype=acc_ref.dtype)

    # scores = q k^T  (contract the D axes directly — no explicit transpose)
    s = lax.dot_general(q_ref[...], k_ref[...],
                        dimension_numbers=(((1,), (1,)), ((), ())),
                        preferred_element_type=jnp.float32)              # (tq, tk)

    m_prev = m_ref[...]                                                  # (tq, 1)
    m_new = jnp.maximum(m_prev, jnp.max(s, axis=-1, keepdims=True))
    alpha = jnp.exp(m_prev - m_new)                                      # (tq, 1)
    p = jnp.exp(s - m_new)                                               # (tq, tk)

    l_ref[...] = alpha * l_ref[...] + jnp.sum(p, axis=-1, keepdims=True)
    acc_ref[...] = alpha * acc_ref[...] + jnp.dot(
        p.astype(v_ref.dtype), v_ref[...], preferred_element_type=jnp.float32)
    m_ref[...] = m_new

    @pl.when(ki == pl.num_programs(3) - 1)
    def _():
        # exact normalization once per query tile (keeps parity with the reference)
        o_ref[...] = (acc_ref[...] / l_ref[...]).astype(o_ref.dtype)


def flash_attention(q, k, v):
    B, H, Sq, D = q.shape
    Sk = k.shape[2]

    sub = _sublane_align(q.dtype)
    tq = _pick_tile(Sq, 512, sub)
    tk = _pick_tile(Sk, 512, sub)
    grid = (B, H, Sq // tq, Sk // tk)

    isz = q.dtype.itemsize
    cost = pl.CostEstimate(
        flops=int(4 * B * H * Sq * Sk * D),
        transcendentals=int(B * H * Sq * Sk),
        bytes_accessed=int(B * H * Sq * D * isz                          # q read once
                           + 2 * B * H * Sk * D * isz * (Sq // tq)       # k, v re-streamed
                           + B * H * Sq * D * isz),                      # output written once
    )

    q_spec = pl.BlockSpec((pl.Squeezed(), pl.Squeezed(), tq, D),
                          lambda b, h, qi, ki: (b, h, qi, 0))
    k_spec = pl.BlockSpec((pl.Squeezed(), pl.Squeezed(), tk, D),
                          lambda b, h, qi, ki: (b, h, ki, 0))
    v_spec = pl.BlockSpec((pl.Squeezed(), pl.Squeezed(), tk, D),
                          lambda b, h, qi, ki: (b, h, ki, 0))
    o_spec = pl.BlockSpec((pl.Squeezed(), pl.Squeezed(), tq, D),
                          lambda b, h, qi, ki: (b, h, qi, 0))

    return pl.pallas_call(
        _flash_attn_kernel,
        out_shape=jax.ShapeDtypeStruct((B, H, Sq, D), q.dtype),
        grid_spec=pltpu.PrefetchScalarGridSpec(
            num_scalar_prefetch=0,
            grid=grid,
            in_specs=[q_spec, k_spec, v_spec],
            out_specs=o_spec,
            scratch_shapes=[
                pltpu.VMEM((tq, 1), jnp.float32),    # running max m
                pltpu.VMEM((tq, 1), jnp.float32),    # running sum l
                pltpu.VMEM((tq, D), jnp.float32),    # output accumulator
            ],
        ),
        compiler_params=pltpu.CompilerParams(
            dimension_semantics=("parallel", "parallel", "parallel", "arbitrary")),
        cost_estimate=cost,
    )(q, k, v)


# ---------------------------------------------------------------------------
# Module wrapper
# ---------------------------------------------------------------------------
def prepare_mha_params(raw, num_heads, compute_dtype=jnp.bfloat16):
    """One-time parameter prep (outside the hot path): transpose weights, fuse
    [Wq|Wk|Wv] along the output dim, fold 1/sqrt(head_dim) into the q projection,
    and pre-cast the matmul operands to the bf16 compute dtype."""
    E = raw["wq"].shape[0]
    assert E % num_heads == 0, "embed_dim must be divisible by num_heads"
    D = E // num_heads
    scale = math.sqrt(D)
    wq = raw["wq"] / scale
    bq = raw["bq"] / scale

    return dict(
        num_heads=num_heads, embed_dim=E, head_dim=D, compute_dtype=compute_dtype,
        # fused self-attention path: x @ (E, 3E)
        w_qkv_t=jnp.concatenate([wq.T, raw["wk"].T, raw["wv"].T],
                                axis=1).astype(compute_dtype),
        b_qkv=jnp.concatenate([bq, raw["bk"], raw["bv"]])[None, :].astype(jnp.float32),
        # separate path (cross-attention with distinct query/key/value)
        wq_t=wq.T.astype(compute_dtype), bq=bq[None, :].astype(jnp.float32),
        wk_t=raw["wk"].T.astype(compute_dtype), bk=raw["bk"][None, :].astype(jnp.float32),
        wv_t=raw["wv"].T.astype(compute_dtype), bv=raw["bv"][None, :].astype(jnp.float32),
        w_o_t=raw["wo"].T.astype(compute_dtype), b_o=raw["bo"][None, :].astype(jnp.float32),
    )


def multi_head_attention(params, query, key=None, value=None, attn_mask=None):
    if attn_mask is not None:
        raise NotImplementedError("attn_mask is not supported by this Pallas kernel")
    # TODO(synk): train-mode dropout on attention weights is not implemented
    # (identity at inference).
    key = query if key is None else key
    value = key if value is None else value

    B, Sq, E = query.shape
    Sk = key.shape[1]
    H = params["num_heads"]
    D = params["head_dim"]
    cdt = params["compute_dtype"]

    def split_heads(y, S):
        # (B*S, E) -> (B, H, S, D): one-time XLA transpose so the attention kernel
        # works on lane-dense, head-major blocks.
        return jnp.transpose(y.reshape(B, S, H, D), (0, 2, 1, 3))

    if (key is query) and (value is query):
        # Self-attention: one wide fused projection, activations read once.
        x = query.reshape(B * Sq, E).astype(cdt)
        qkv = linear(x, params["w_qkv_t"], params["b_qkv"], out_dtype=cdt)   # (B*Sq, 3E)
        qkv = qkv.reshape(B, Sq, 3, H, D)
        q = jnp.transpose(qkv[:, :, 0], (0, 2, 1, 3))
        k = jnp.transpose(qkv[:, :, 1], (0, 2, 1, 3))
        v = jnp.transpose(qkv[:, :, 2], (0, 2, 1, 3))
    else:
        q = split_heads(linear(query.reshape(B * Sq, E).astype(cdt),
                               params["wq_t"], params["bq"], out_dtype=cdt), Sq)
        k = split_heads(linear(key.reshape(B * Sk, E).astype(cdt),
                               params["wk_t"], params["bk"], out_dtype=cdt), Sk)
        v = split_heads(linear(value.reshape(B * Sk, E).astype(cdt),
                               params["wv_t"], params["bv"], out_dtype=cdt), Sk)

    attn = flash_attention(q, k, v)                                          # (B,H,Sq,D)
    attn = jnp.transpose(attn, (0, 2, 1, 3)).reshape(B * Sq, E)              # merge heads

    out = linear(attn, params["w_o_t"], params["b_o"], out_dtype=query.dtype)
    return out.reshape(B, Sq, E)


# ---------------------------------------------------------------------------
# Pure-JAX reference for correctness checking
# ---------------------------------------------------------------------------
def reference_mha(raw, query, key, value, num_heads):
    B, Sq, E = query.shape
    D = E // num_heads
    scale = math.sqrt(D)

    def proj(x, w, b):
        return x @ w.T + b

    def split(y, S):
        return jnp.transpose(y.reshape(B, S, num_heads, D), (0, 2, 1, 3))

    q = split(proj(query, raw["wq"], raw["bq"]), Sq)
    k = split(proj(key, raw["wk"], raw["bk"]), key.shape[1])
    v = split(proj(value, raw["wv"], raw["bv"]), key.shape[1])

    scores = jnp.einsum("bhqd,bhkd->bhqk", q, k) / scale
    attn = jax.nn.softmax(scores, axis=-1)
    out = jnp.einsum("bhqk,bhkd->bhqd", attn, v)
    out = jnp.transpose(out, (0, 2, 1, 3)).reshape(B, Sq, E)
    return out @ raw["wo"].T + raw["bo"]


if __name__ == "__main__":
    embed_dim = 32
    num_heads = 4
    batch = 2
    seq = 8

    key0 = jax.random.PRNGKey(0)
    keys = jax.random.split(key0, 12)

    def init_linear(kw, kb, fan_in, fan_out):
        bound = 1.0 / math.sqrt(fan_in)
        w = jax.random.uniform(kw, (fan_out, fan_in), jnp.float32, -bound, bound)
        b = jax.random.uniform(kb, (fan_out,), jnp.float32, -bound, bound)
        return w, b

    wq, bq = init_linear(keys[0], keys[1], embed_dim, embed_dim)
    wk, bk = init_linear(keys[2], keys[3], embed_dim, embed_dim)
    wv, bv = init_linear(keys[4], keys[5], embed_dim, embed_dim)
    wo, bo = init_linear(keys[6], keys[7], embed_dim, embed_dim)
    raw_params = dict(wq=wq, bq=bq, wk=wk, bk=bk, wv=wv, bv=bv, wo=wo, bo=bo)

    params = prepare_mha_params(raw_params, num_heads)   # one-time weight prep (bf16)

    # bf16 MXU operands -> tolerance reflects bf16 rounding, not approx reciprocal.
    tol = dict(atol=2e-2, rtol=2e-2)

    # 1) Self-attention (fused QKV projection path).
    x = jax.random.normal(keys[8], (batch, seq, embed_dim), jnp.float32)
    out_self = jax.block_until_ready(multi_head_attention(params, x, x, x))
    ref_self = reference_mha(raw_params, x, x, x, num_heads)
    assert out_self.shape == (batch, seq, embed_dim)
    assert jnp.allclose(out_self, ref_self, **tol), "self-attention mismatch vs reference"

    # 2) Distinct query/key/value (separate projection path).
    query = jax.random.normal(keys[9], (batch, seq, embed_dim), jnp.float32)
    key_in = jax.random.normal(keys[10], (batch, seq, embed_dim), jnp.float32)
    value = jax.random.normal(keys[11], (batch, seq, embed_dim), jnp.float32)
    out = jax.block_until_ready(multi_head_attention(params, query, key_in, value))
    ref = reference_mha(raw_params, query, key_in, value, num_heads)
    assert out.shape == (batch, seq, embed_dim)
    assert jnp.allclose(out, ref, **tol), "cross-attention mismatch vs reference"

    print("KERNEL_OK")
</pallas_src>

<mosaic_0001>
module attributes {stable_mosaic.version = 11 : i64} {
  func.func @_linear_kernel(%arg0: i32, %arg1: i32, %arg2: i32, %arg3: memref<16x32xbf16, #tpu.memory_space<vmem>>, %arg4: memref<32x96xbf16, #tpu.memory_space<vmem>>, %arg5: memref<1x96xf32, #tpu.memory_space<vmem>>, %arg6: memref<16x96xbf16, #tpu.memory_space<vmem>>, %arg7: memref<16x96xf32, #tpu.memory_space<vmem>>) attributes {dimension_semantics = [#tpu.dimension_semantics<parallel>, #tpu.dimension_semantics<parallel>, #tpu.dimension_semantics<arbitrary>], iteration_bounds = array<i64: 1, 1, 1>, scalar_prefetch = 0 : i64, scratch_operands = 1 : i64, tpu.core_type = #tpu.core_type<tc>, window_params = [{transform_indices = @transform_0, window_bounds = array<i64: 16, 32>}, {transform_indices = @transform_1, window_bounds = array<i64: 32, 96>}, {transform_indices = @transform_2, window_bounds = array<i64: 1, 96>}, {transform_indices = @transform_3, window_bounds = array<i64: 16, 96>}]} {
    %c0_i32 = arith.constant 0 : i32
    %0 = arith.cmpi eq, %arg2, %c0_i32 : i32
    %1 = arith.extui %0 : i1 to i32
    %c0_i32_0 = arith.constant 0 : i32
    %2 = arith.cmpi ne, %1, %c0_i32_0 : i32
    scf.if %2 {
      %cst_10 = arith.constant 0.000000e+00 : f32
      %12 = vector.broadcast %cst_10 : f32 to vector<16x96xf32>
      %c0_11 = arith.constant 0 : index
      %c0_12 = arith.constant 0 : index
      %13 = vector.load %arg7[%c0_11, %c0_12] : memref<16x96xf32, #tpu.memory_space<vmem>>, vector<16x96xf32>
      tpu.vector_store %arg7[%c0_11, %c0_12], %12 {strides = array<i32>} : memref<16x96xf32, #tpu.memory_space<vmem>>, vector<16x96xf32>,
    } else {
    }
    %c0 = arith.constant 0 : index
    %c0_1 = arith.constant 0 : index
    %3 = vector.load %arg7[%c0, %c0_1] : memref<16x96xf32, #tpu.memory_space<vmem>>, vector<16x96xf32>
    %c0_2 = arith.constant 0 : index
    %c0_3 = arith.constant 0 : index
    %4 = vector.load %arg3[%c0_2, %c0_3] : memref<16x32xbf16, #tpu.memory_space<vmem>>, vector<16x32xbf16>
    %c0_4 = arith.constant 0 : index
    %c0_5 = arith.constant 0 : index
    %5 = vector.load %arg4[%c0_4, %c0_5] : memref<32x96xbf16, #tpu.memory_space<vmem>>, vector<32x96xbf16>
    %cst = arith.constant dense<0.000000e+00> : vector<16x96xf32>
    %6 = tpu.matmul %4, %5, %cst {dimension_numbers = #tpu.dot_dimension_numbers<[1], [0], [0], [1], [0, 0, 1, 1], [], []>} : vector<16x32xbf16>, vector<32x96xbf16>, vector<16x96xf32> -> vector<16x96xf32>
    %7 = arith.addf %3, %6 : vector<16x96xf32>
    %c0_6 = arith.constant 0 : index
    %c0_7 = arith.constant 0 : index
    %8 = vector.load %arg7[%c0_6, %c0_7] : memref<16x96xf32, #tpu.memory_space<vmem>>, vector<16x96xf32>
    tpu.vector_store %arg7[%c0_6, %c0_7], %7 {strides = array<i32>} : memref<16x96xf32, #tpu.memory_space<vmem>>, vector<16x96xf32>,
    %c0_i32_8 = arith.constant 0 : i32
    %9 = arith.cmpi eq, %arg2, %c0_i32_8 : i32
    %10 = arith.extui %9 : i1 to i32
    %c0_i32_9 = arith.constant 0 : i32
    %11 = arith.cmpi ne, %10, %c0_i32_9 : i32
    scf.if %11 {
      %c0_10 = arith.constant 0 : index
      %c0_11 = arith.constant 0 : index
      %12 = vector.load %arg7[%c0_10, %c0_11] : memref<16x96xf32, #tpu.memory_space<vmem>>, vector<16x96xf32>
      %c0_12 = arith.constant 0 : index
      %c0_13 = arith.constant 0 : index
      %13 = vector.load %arg5[%c0_12, %c0_13] : memref<1x96xf32, #tpu.memory_space<vmem>>, vector<1x96xf32>
      %14 = vector.broadcast %13 : vector<1x96xf32> to vector<16x96xf32>
      %15 = arith.addf %12, %14 : vector<16x96xf32>
      %16 = arith.truncf %15 : vector<16x96xf32> to vector<16x96xbf16>
      %c0_14 = arith.constant 0 : index
      %c0_15 = arith.constant 0 : index
      %17 = vector.load %arg6[%c0_14, %c0_15] : memref<16x96xbf16, #tpu.memory_space<vmem>>, vector<16x96xbf16>
      tpu.vector_store %arg6[%c0_14, %c0_15], %16 {strides = array<i32>} : memref<16x96xbf16, #tpu.memory_space<vmem>>, vector<16x96xbf16>,
    } else {
    }
    return
  }
  func.func @transform_0(%arg0: i32, %arg1: i32, %arg2: i32) -> (i32, i32) {
    %c0_i32 = arith.constant 0 : i32
    return %arg0, %arg2 : i32, i32
  }
  func.func @transform_1(%arg0: i32, %arg1: i32, %arg2: i32) -> (i32, i32) {
    %c0_i32 = arith.constant 0 : i32
    return %arg2, %arg1 : i32, i32
  }
  func.func @transform_2(%arg0: i32, %arg1: i32, %arg2: i32) -> (i32, i32) {
    %c0_i32 = arith.constant 0 : i32
    %c0_i32_0 = arith.constant 0 : i32
    return %c0_i32, %arg1 : i32, i32
  }
  func.func @transform_3(%arg0: i32, %arg1: i32, %arg2: i32) -> (i32, i32) {
    %c0_i32 = arith.constant 0 : i32
    return %arg0, %arg1 : i32, i32
  }
}

</mosaic_0001>

<llo_original>
// kernel: tpu_custom_call.1
$region0: #{tpu_custom_call.1}
  #allocation0 [shape = 'u32[]', space=smem, size = 0x4, offset = 0x4, fixed_abs, tag = 'smem constant byte address 0x4 - core index']
  #allocation1 [shape = 'u32[72,128]{1,0:T(1,128)}', space=vmem, size = 0x9000, scoped, tag = 'internal scratch']
  #allocation2 [shape = 'f32[16,96]{1,0:T(8,128)}', space=vmem, size = 0x2000, scoped, tag = 'scratch operand']
  %s0 = inlined_call_operand.hbm [shape: bf16[16,32], index: 0, kind: input, shape index: {}]
  %s1 = inlined_call_operand.hbm [shape: bf16[32,96], index: 1, kind: input, shape index: {}]
  %s2 = inlined_call_operand.vmem [shape: f32[1,96], index: 2, kind: input, shape index: {}]
  %s3 = inlined_call_operand.hbm [shape: bf16[16,96], index: 3, kind: output, shape index: {}]
  %s4 = sld [smem:[#allocation0]]
  $region38: #{tpu_custom_call.1} parent=0
    _
  %s6 = ssub.s32 1, %s4
  %s7 = scalar_select 0, %s6, %s4
  $region1: #{tpu_custom_call.1} parent=0
    #allocation3 [shape = 'u8[4096]{0}', space=vmem, size = 0x1000, scoped, tag = 'input window, operand 0, single buffered']
    #allocation4 [shape = 's32[1]{0}', space=sflag, size = 0x4, scoped, tag = 'scoped memory for tpu_custom_call.1']
    #allocation5 [shape = 's32[1]{0}', space=sflag, size = 0x4, scoped, tag = 'scoped memory for tpu_custom_call.1']
    #allocation6 [shape = 'u8[8192]{0}', space=vmem, size = 0x2000, scoped, tag = 'input window, operand 1, single buffered']
    #allocation7 [shape = 's32[1]{0}', space=sflag, size = 0x4, scoped, tag = 'scoped memory for tpu_custom_call.1']
    #allocation8 [shape = 'u8[4096]{0}', space=vmem, size = 0x1000, scoped, tag = 'output window, operand 0, single buffered']
    %8 = vsyncpa [#allocation4], 0
    %9 = vsyncpa [#allocation7], 0
    %10 = vsyncpa [#allocation5], 0
    // Predicated region
    $region2: #{tpu_custom_call.1} parent=1 // pred_check
      _
    $region3: #{tpu_custom_call.1} parent=1 // pred_check_branch
      %12 = sbr.rel (0) target = $region5
    $region4: #{tpu_custom_call.1} parent=1 // pred_region
      %14 = vsyncadd [#allocation4], 0
      %s15 = sshll.u32 %s0, 4
      %s16 = int_to_ptr.hbm [resolvable:$true] %s15
      %s17 = sshll.u32 [#allocation3], 4
      %s18 = int_to_ptr.vmem [resolvable:$true] %s17
      %23 = dma.hbm_to_vmem [thread:$0]  %s16, 128, %s18, [#allocation4], 64, 64, 4
    $region5: #{tpu_custom_call.1} parent=1 // pred_fallthru
      _
    // Predicated region
    $region6: #{tpu_custom_call.1} parent=1 // pred_check
      _
    $region7: #{tpu_custom_call.1} parent=1 // pred_check_branch
      %25 = sbr.rel (0) target = $region9
    $region8: #{tpu_custom_call.1} parent=1 // pred_region
      %27 = vsyncadd [#allocation7], 0
      %s28 = sshll.u32 %s1, 4
      %s29 = int_to_ptr.hbm [resolvable:$true] %s28
      %s30 = sshll.u32 [#allocation6], 4
      %s31 = int_to_ptr.vmem [resolvable:$true] %s30
      %36 = dma.hbm_to_vmem [thread:$0]  %s29, 256, %s31, [#allocation7], 64, 64, 4
    $region9: #{tpu_custom_call.1} parent=1 // pred_fallthru
      _
    // Predicated region
    $region10: #{tpu_custom_call.1} parent=1 // pred_check
      _
    $region11: #{tpu_custom_call.1} parent=1 // pred_check_branch
      %38 = sbr.rel (0) target = $region13
    $region12: #{tpu_custom_call.1} parent=1 // pred_region
      _
    $region13: #{tpu_custom_call.1} parent=1 // pred_fallthru
      _
    // Predicated region
    $region14: #{tpu_custom_call.1} parent=1 // pred_check
      _
    $region15: #{tpu_custom_call.1} parent=1 // pred_check_branch
      %40 = sbr.rel (0) target = $region17
    $region16: #{tpu_custom_call.1} parent=1 // pred_region
      %42 = dma.done [#allocation4], 128
    $region17: #{tpu_custom_call.1} parent=1 // pred_fallthru
      _
    // Predicated region
    $region18: #{tpu_custom_call.1} parent=1 // pred_check
      _
    $region19: #{tpu_custom_call.1} parent=1 // pred_check_branch
      %44 = sbr.rel (0) target = $region21
    $region20: #{tpu_custom_call.1} parent=1 // pred_region
      %46 = dma.done [#allocation7], 256
    $region21: #{tpu_custom_call.1} parent=1 // pred_fallthru
      _
    %p48 = scmp.eq.s32.totalorder 0, 0
    // Predicated region
    $region22: #{tpu_custom_call.1} parent=1 // pred_check
      %p49 = pneg %p48
    $region23: #{tpu_custom_call.1} parent=1 // pred_check_branch
      %51 = sbr.rel (%p49) target = $region25
    $region24: #{tpu_custom_call.1} parent=1 // pred_region
      %vm52 = vcmask 785408
      %53 = vst.msk [vmem:[#allocation2] sm:$0xff] %vm52, 0.0
      %54 = vst.msk [vmem:[#allocation2 + $0x8] sm:$0xff] %vm52, 0.0
    $region25: #{tpu_custom_call.1} parent=1 // pred_fallthru
      _
    %v55 = vld [vmem:[#allocation2] sm:$0xff]
    %v56 = vld [vmem:[#allocation2 + $0x8] sm:$0xff]
    %v57 = vld [vmem:[#allocation3] sm:$0xf]
    %v58 = vld [vmem:[#allocation3 + $0x4] sm:$0xf]
    %v59 = vld [vmem:[#allocation6] sm:$0xf]
    %v60 = vld [vmem:[#allocation6 + $0x4] sm:$0xf]
    %v61 = vld [vmem:[#allocation6 + $0x8] sm:$0xf]
    %v62 = vld [vmem:[#allocation6 + $0xc] sm:$0xf]
    %v65 = vunpack.c.l.b16 %v57
    %v66 = vunpack.c.l.b16 %v58
    %v67 = vpack.c.b16 %v66, %v65
    %v72 = vunpack.c.l.b16 %v59
    %v73 = vunpack.c.l.b16 %v60
    %v74 = vunpack.c.l.b16 %v61
    %v75 = vunpack.c.l.b16 %v62
    %v76 = vpack.c.b16 %v73, %v72
    %v77 = vpack.c.b16 %v75, %v74
    %vm80 = vcmask 261120
    %v82 = vsel %vm80, %v67, 0
    %84 = vmatpush.bf16.msra.mxu0 0
    %85 = vmatpush.bf16.msra.mxu0 0
    %86 = vmatpush.bf16.msra.mxu0 0
    %87 = vmatpush.bf16.msra.mxu0 0
    %88 = vmatpush.bf16.msra.mxu0 0
    %89 = vmatpush.bf16.msra.mxu0 0
    %90 = vmatpush.bf16.msra.mxu0 %v77
    %91 = vmatpush.bf16.msra.mxu0 %v76
    %92 = vmatmul.bf16.gmra.mxu0 %v82
    %v93 = vpop.f32.mrf.mxu0
    %v94 = vadd.f32 0.0, %v93
    %v95 = vpop.f32.mrf.mxu0
    %v96 = vadd.f32 0.0, %v95
    %97 = vdwg.mxu0
    %v98 = vadd.f32 %v55, %v94
    %v99 = vadd.f32 %v56, %v96
    %vm100 = vcmask 785408
    %101 = vst.msk [vmem:[#allocation2] sm:$0xff] %vm100, %v98
    %102 = vst.msk [vmem:[#allocation2 + $0x8] sm:$0xff] %vm100, %v99
    // Predicated region
    $region26: #{tpu_custom_call.1} parent=1 // pred_check
      %p103 = pneg %p48
    $region27: #{tpu_custom_call.1} parent=1 // pred_check_branch
      %105 = sbr.rel (%p103) target = $region29
    $region28: #{tpu_custom_call.1} parent=1 // pred_region
      %v106 = vld [vmem:[#allocation2] sm:$0xff]
      %v107 = vld [vmem:[#allocation2 + $0x8] sm:$0xff]
      %v108 = vld [vmem:[%s2] sm:$0x1]
      %v110 = vperm.slane %v108, 0
      %v112 = vadd.f32 %v106, %v110
      %v113 = vadd.f32 %v107, %v110
      %v114 = vpack.c.bf16 %v112, %v112
      %v115 = vpack.c.bf16 %v113, %v113
      %vm116 = vcmask 781312
      %117 = vst.msk [vmem:[#allocation8] sm:$0xf] %vm116, %v114
      %118 = vst.msk [vmem:[#allocation8 + $0x4] sm:$0xf] %vm116, %v115
    $region29: #{tpu_custom_call.1} parent=1 // pred_fallthru
      _
    // Predicated region
    $region30: #{tpu_custom_call.1} parent=1 // pred_check
      _
    $region31: #{tpu_custom_call.1} parent=1 // pred_check_branch
      %120 = sbr.rel (0) target = $region33
    $region32: #{tpu_custom_call.1} parent=1 // pred_region
      %122 = vsyncadd [#allocation5], 0
      %s123 = sshll.u32 [#allocation8], 4
      %s124 = int_to_ptr.vmem [resolvable:$true] %s123
      %s125 = sshll.u32 %s3, 4
      %s126 = int_to_ptr.hbm [resolvable:$true] %s125
      %131 = dma.vmem_to_hbm [thread:$0]  %s124, 128, %s126, [#allocation5], 64, 64, 4
    $region33: #{tpu_custom_call.1} parent=1 // pred_fallthru
      _
    // Predicated region
    $region34: #{tpu_custom_call.1} parent=1 // pred_check
      _
    $region35: #{tpu_custom_call.1} parent=1 // pred_check_branch
      %133 = sbr.rel (0) target = $region37
    $region36: #{tpu_custom_call.1} parent=1 // pred_region
      %135 = dma.done [#allocation5], 128
    $region37: #{tpu_custom_call.1} parent=1 // pred_fallthru
      _
    %136 = vsyncpa [#allocation4], 1
    %137 = vsyncpa [#allocation7], 1
    %138 = vsyncpa [#allocation5], 1

</llo_original>
